<compile_context>
chip_gen: v7x
topology: tpu7x:2x2x1
jax: 0.10.0
libtpu: 0.0.40
codegen_flags: <defaults>
</compile_context>

<pallas_src>
import functools

import jax
import jax.numpy as jnp
from jax.experimental import pallas as pl
from jax.experimental.pallas import tpu as pltpu

IN_FEATURES = 1053          # KWSNet fc1 input width
NUM_CLASSES = 4             # KWSNet fc2 output width
N_PAD = 128                 # lane-dense output slab; cols 0:4 are real classes
NEG_BIG = -1e30             # pre-bias for padded class columns (bf16-safe too)


def kws_kernel(x_ref, w1_ref, b1_ref, w2_ref, b2_ref, o_ref):
    # fc1: bf16 x bf16 on the MXU with f32 accumulation; bias + ReLU on VPU.
    h = jnp.dot(x_ref[...], w1_ref[...], preferred_element_type=jnp.float32)
    h = jnp.maximum(h + b1_ref[...], 0.0)

    # fc2: f32 matmul (tiny: K = h_pad, N = 128) + bias.  Padded class columns
    # have zero weights and a -1e30 bias, so they never affect max / logsumexp.
    logits = jnp.dot(h, w2_ref[...], preferred_element_type=jnp.float32)
    logits = logits + b2_ref[...]

    # Numerically stable log_softmax over the class axis.
    m = jnp.max(logits, axis=-1, keepdims=True)
    shifted = logits - m
    lse = jnp.log(jnp.sum(jnp.exp(shifted), axis=-1, keepdims=True))
    o_ref[...] = (shifted - lse).astype(o_ref.dtype)


def pack_params(w1_t, b1, w2_t, b2):
    """Pack weights once (hoist out of the per-forward path).

    w1_t: [1053, hl] (transpose of PyTorch fc1.weight), b1: [hl]
    w2_t: [hl, 4]    (transpose of PyTorch fc2.weight), b2: [4]
    Returns (w1_p [1053, h_pad] bf16, b1_p [1, h_pad] f32,
             w2_p [h_pad, N_PAD] f32, b2_p [1, N_PAD] f32).
    """
    hl = w1_t.shape[1]
    h_pad = ((hl + 127) // 128) * 128    # lane-align hidden dim

    w1_p = jnp.zeros((IN_FEATURES, h_pad), jnp.float32)
    w1_p = w1_p.at[:, :hl].set(w1_t).astype(jnp.bfloat16)

    b1_p = jnp.zeros((1, h_pad), jnp.float32).at[0, :hl].set(b1.reshape(-1))

    w2_p = jnp.zeros((h_pad, N_PAD), jnp.float32)
    w2_p = w2_p.at[:hl, :NUM_CLASSES].set(w2_t)

    b2_p = jnp.full((1, N_PAD), NEG_BIG, jnp.float32)
    b2_p = b2_p.at[0, :NUM_CLASSES].set(b2.reshape(-1))
    return w1_p, b1_p, w2_p, b2_p


def _choose_batch_tile(batch, max_tile=512):
    """>=2 grid steps when possible (v7x has 2 TensorCores); sublane-aligned."""
    half = pl.cdiv(batch, 2)
    return int(min(max_tile, max(8, ((half + 7) // 8) * 8)))


def kws_forward(x, packed, *, batch_tile=None, out_dtype=jnp.float32):
    """x: [B, 1053] (bf16 preferred; f32 is cast once).  Returns [B, 4] log-probs."""
    assert x.shape[1] == IN_FEATURES
    w1_p, b1_p, w2_p, b2_p = packed
    h_pad = w1_p.shape[1]
    B = x.shape[0]

    if x.dtype != jnp.bfloat16:
        x = x.astype(jnp.bfloat16)       # single cast; ideally caller feeds bf16

    if batch_tile is None:
        batch_tile = _choose_batch_tile(B)
    b_pad = pl.cdiv(B, batch_tile) * batch_tile
    if b_pad != B:
        # Row-only zero pad (no feature padding, no dtype round trip); only hit
        # when B is not tile-aligned.
        x = jnp.pad(x, ((0, b_pad - B), (0, 0)))

    out = pl.pallas_call(
        kws_kernel,
        out_shape=jax.ShapeDtypeStruct((b_pad, N_PAD), out_dtype),
        grid=(b_pad // batch_tile,),
        in_specs=[
            # x tiles stream through VMEM (double-buffered by Pallas).
            pl.BlockSpec((batch_tile, IN_FEATURES), lambda i: (i, 0)),
            # Weights / biases: constant index_map -> DMA'd once, VMEM-resident.
            pl.BlockSpec((IN_FEATURES, h_pad), lambda i: (0, 0)),
            pl.BlockSpec((1, h_pad), lambda i: (0, 0)),
            pl.BlockSpec((h_pad, N_PAD), lambda i: (0, 0)),
            pl.BlockSpec((1, N_PAD), lambda i: (0, 0)),
        ],
        out_specs=pl.BlockSpec((batch_tile, N_PAD), lambda i: (i, 0)),
        compiler_params=pltpu.CompilerParams(
            dimension_semantics=("parallel",)),
    )(x, w1_p, b1_p, w2_p, b2_p)

    return out[:B, :NUM_CLASSES]


def init_params(key, hl_size):
    """Deterministic init matching nn.init.uniform_(-1, 1) on all params."""
    k1, k2, k3, k4 = jax.random.split(key, 4)
    # PyTorch Linear weight is (out, in); we store the transpose (in, out).
    w1_t = jax.random.uniform(k1, (IN_FEATURES, hl_size), jnp.float32, -1.0, 1.0)
    b1 = jax.random.uniform(k2, (hl_size,), jnp.float32, -1.0, 1.0)
    w2_t = jax.random.uniform(k3, (hl_size, NUM_CLASSES), jnp.float32, -1.0, 1.0)
    b2 = jax.random.uniform(k4, (NUM_CLASSES,), jnp.float32, -1.0, 1.0)
    return w1_t, b1, w2_t, b2


def reference_forward(x, w1_t, b1, w2_t, b2):
    """Pure-JAX reference matching the kernel's precision choices
    (bf16 fc1 operands, f32 accumulation, f32 bias adds and softmax math)."""
    xb = x.astype(jnp.bfloat16)
    w1b = w1_t.astype(jnp.bfloat16)
    h = jnp.maximum(
        jnp.dot(xb, w1b, preferred_element_type=jnp.float32) + b1.reshape(1, -1),
        0.0)
    logits = jnp.dot(h, w2_t, preferred_element_type=jnp.float32) + b2.reshape(1, -1)
    return jax.nn.log_softmax(logits, axis=1)


if __name__ == "__main__":
    key = jax.random.PRNGKey(0)
    kx, kp = jax.random.split(key)

    B = 2          # batch
    hl_size = 32   # hidden layer size
    x = jax.random.normal(kx, (B, IN_FEATURES), jnp.float32)
    w1_t, b1, w2_t, b2 = init_params(kp, hl_size)

    # Pack once (outside the per-forward path), then jit the forward so the
    # trailing [:B, :4] slice fuses with the pallas_call.
    packed = jax.tree.map(jax.block_until_ready, pack_params(w1_t, b1, w2_t, b2))
    fwd = jax.jit(functools.partial(kws_forward, batch_tile=None,
                                    out_dtype=jnp.float32))

    out = jax.block_until_ready(fwd(x, packed))

    ref = reference_forward(x, w1_t, b1, w2_t, b2)
    assert out.shape == (B, NUM_CLASSES)
    assert jnp.allclose(out, ref, atol=5e-2, rtol=1e-3), (out, ref)

    print("KERNEL_OK")
</pallas_src>

<mosaic_0001>
module attributes {stable_mosaic.version = 11 : i64} {
  func.func @kws_kernel(%arg0: i32, %arg1: memref<8x1053xbf16, #tpu.memory_space<vmem>>, %arg2: memref<1053x128xbf16, #tpu.memory_space<vmem>>, %arg3: memref<1x128xf32, #tpu.memory_space<vmem>>, %arg4: memref<128x128xf32, #tpu.memory_space<vmem>>, %arg5: memref<1x128xf32, #tpu.memory_space<vmem>>, %arg6: memref<8x128xf32, #tpu.memory_space<vmem>>) attributes {dimension_semantics = [#tpu.dimension_semantics<parallel>], iteration_bounds = array<i64: 1>, scalar_prefetch = 0 : i64, scratch_operands = 0 : i64, tpu.core_type = #tpu.core_type<tc>, window_params = [{transform_indices = @transform_0, window_bounds = array<i64: 8, 1053>}, {pipeline_mode = #tpu.pipeline_mode<synchronous>, transform_indices = @transform_1, window_bounds = array<i64: 1053, 128>}, {pipeline_mode = #tpu.pipeline_mode<synchronous>, transform_indices = @transform_2, window_bounds = array<i64: 1, 128>}, {pipeline_mode = #tpu.pipeline_mode<synchronous>, transform_indices = @transform_3, window_bounds = array<i64: 128, 128>}, {pipeline_mode = #tpu.pipeline_mode<synchronous>, transform_indices = @transform_4, window_bounds = array<i64: 1, 128>}, {transform_indices = @transform_5, window_bounds = array<i64: 8, 128>}]} {
    %c0 = arith.constant 0 : index
    %c0_0 = arith.constant 0 : index
    %0 = vector.load %arg1[%c0, %c0_0] : memref<8x1053xbf16, #tpu.memory_space<vmem>>, vector<8x1053xbf16>
    %c0_1 = arith.constant 0 : index
    %c0_2 = arith.constant 0 : index
    %1 = vector.load %arg2[%c0_1, %c0_2] : memref<1053x128xbf16, #tpu.memory_space<vmem>>, vector<1053x128xbf16>
    %cst = arith.constant dense<0.000000e+00> : vector<8x128xf32>
    %2 = tpu.matmul %0, %1, %cst {dimension_numbers = #tpu.dot_dimension_numbers<[1], [0], [0], [1], [0, 0, 1, 1], [], []>} : vector<8x1053xbf16>, vector<1053x128xbf16>, vector<8x128xf32> -> vector<8x128xf32>
    %c0_3 = arith.constant 0 : index
    %c0_4 = arith.constant 0 : index
    %3 = vector.load %arg3[%c0_3, %c0_4] : memref<1x128xf32, #tpu.memory_space<vmem>>, vector<1x128xf32>
    %4 = vector.broadcast %3 : vector<1x128xf32> to vector<8x128xf32>
    %5 = arith.addf %2, %4 : vector<8x128xf32>
    %cst_5 = arith.constant 0.000000e+00 : f32
    %6 = vector.broadcast %cst_5 : f32 to vector<8x128xf32>
    %7 = arith.maximumf %5, %6 : vector<8x128xf32>
    %c0_6 = arith.constant 0 : index
    %c0_7 = arith.constant 0 : index
    %8 = vector.load %arg4[%c0_6, %c0_7] : memref<128x128xf32, #tpu.memory_space<vmem>>, vector<128x128xf32>
    %cst_8 = arith.constant dense<0.000000e+00> : vector<8x128xf32>
    %9 = tpu.matmul %7, %8, %cst_8 {dimension_numbers = #tpu.dot_dimension_numbers<[1], [0], [0], [1], [0, 0, 1, 1], [], []>} : vector<8x128xf32>, vector<128x128xf32>, vector<8x128xf32> -> vector<8x128xf32>
    %c0_9 = arith.constant 0 : index
    %c0_10 = arith.constant 0 : index
    %10 = vector.load %arg5[%c0_9, %c0_10] : memref<1x128xf32, #tpu.memory_space<vmem>>, vector<1x128xf32>
    %11 = vector.broadcast %10 : vector<1x128xf32> to vector<8x128xf32>
    %12 = arith.addf %9, %11 : vector<8x128xf32>
    %cst_11 = arith.constant dense<0xFF800000> : vector<8xf32>
    %13 = vector.multi_reduction <maximumf>, %12, %cst_11 [1] : vector<8x128xf32> to vector<8xf32>
    %14 = vector.shape_cast %13 : vector<8xf32> to vector<8x1xf32>
    %15 = vector.broadcast %14 : vector<8x1xf32> to vector<8x128xf32>
    %16 = arith.subf %12, %15 : vector<8x128xf32>
    %17 = math.exp %16 : vector<8x128xf32>
    %cst_12 = arith.constant dense<0.000000e+00> : vector<8xf32>
    %18 = vector.multi_reduction <add>, %17, %cst_12 [1] : vector<8x128xf32> to vector<8xf32>
    %19 = vector.shape_cast %18 : vector<8xf32> to vector<8x1xf32>
    %20 = math.log %19 : vector<8x1xf32>
    %21 = vector.broadcast %20 : vector<8x1xf32> to vector<8x128xf32>
    %22 = arith.subf %16, %21 : vector<8x128xf32>
    %c0_13 = arith.constant 0 : index
    %c0_14 = arith.constant 0 : index
    %23 = vector.load %arg6[%c0_13, %c0_14] : memref<8x128xf32, #tpu.memory_space<vmem>>, vector<8x128xf32>
    tpu.vector_store %arg6[%c0_13, %c0_14], %22 {strides = array<i32>} : memref<8x128xf32, #tpu.memory_space<vmem>>, vector<8x128xf32>,
    return
  }
  func.func @transform_0(%arg0: i32) -> (i32, i32) {
    %c0_i32 = arith.constant 0 : i32
    %c0_i32_0 = arith.constant 0 : i32
    return %arg0, %c0_i32 : i32, i32
  }
  func.func @transform_1(%arg0: i32) -> (i32, i32) {
    %c0_i32 = arith.constant 0 : i32
    %c0_i32_0 = arith.constant 0 : i32
    %c0_i32_1 = arith.constant 0 : i32
    return %c0_i32, %c0_i32_0 : i32, i32
  }
  func.func @transform_2(%arg0: i32) -> (i32, i32) {
    %c0_i32 = arith.constant 0 : i32
    %c0_i32_0 = arith.constant 0 : i32
    %c0_i32_1 = arith.constant 0 : i32
    return %c0_i32, %c0_i32_0 : i32, i32
  }
  func.func @transform_3(%arg0: i32) -> (i32, i32) {
    %c0_i32 = arith.constant 0 : i32
    %c0_i32_0 = arith.constant 0 : i32
    %c0_i32_1 = arith.constant 0 : i32
    return %c0_i32, %c0_i32_0 : i32, i32
  }
  func.func @transform_4(%arg0: i32) -> (i32, i32) {
    %c0_i32 = arith.constant 0 : i32
    %c0_i32_0 = arith.constant 0 : i32
    %c0_i32_1 = arith.constant 0 : i32
    return %c0_i32, %c0_i32_0 : i32, i32
  }
  func.func @transform_5(%arg0: i32) -> (i32, i32) {
    %c0_i32 = arith.constant 0 : i32
    %c0_i32_0 = arith.constant 0 : i32
    return %arg0, %c0_i32 : i32, i32
  }
}

</mosaic_0001>

<llo_original>
// kernel: kws_forward.1
$region0: #{kws_forward.1}
  #allocation0 [shape = 'u32[]', space=smem, size = 0x4, offset = 0x4, fixed_abs, tag = 'smem constant byte address 0x4 - core index']
  #allocation1 [shape = 'u32[144,128]{1,0:T(1,128)}', space=vmem, size = 0x12000, scoped, tag = 'internal scratch']
  %s0 = inlined_call_operand.vmem [shape: bf16[8,1053], index: 0, kind: input, shape index: {}]
  %s1 = inlined_call_operand.hbm [shape: bf16[1053,128], index: 1, kind: input, shape index: {}]
  %s2 = inlined_call_operand.vmem [shape: f32[1,128], index: 2, kind: input, shape index: {}]
  %s3 = inlined_call_operand.hbm [shape: f32[128,128], index: 3, kind: input, shape index: {}]
  %s4 = inlined_call_operand.vmem [shape: f32[1,128], index: 4, kind: input, shape index: {}]
  %s5 = inlined_call_operand.vmem [shape: f32[8,128], index: 5, kind: output, shape index: {}]
  %s6 = sld [smem:[#allocation0]]
  $region38: #{kws_forward.1} parent=0
    _
  %s8 = ssub.s32 1, %s6
  %s9 = scalar_select 0, %s8, %s6
  $region1: #{kws_forward.1} parent=0
    #allocation2 [shape = 'u8[270336]{0}', space=vmem, size = 0x42000, scoped, tag = 'input window, operand 1, single buffered']
    #allocation3 [shape = 's32[1]{0}', space=sflag, size = 0x4, scoped, tag = 'scoped memory for kws_forward.1']
    #allocation4 [shape = 'u8[65536]{0}', space=vmem, size = 0x10000, scoped, tag = 'input window, operand 3, single buffered']
    #allocation5 [shape = 's32[1]{0}', space=sflag, size = 0x4, scoped, tag = 'scoped memory for kws_forward.1']
    %10 = vsyncpa [#allocation3], 0
    %11 = vsyncpa [#allocation5], 0
    // Predicated region
    $region2: #{kws_forward.1} parent=1 // pred_check
      _
    $region3: #{kws_forward.1} parent=1 // pred_check_branch
      %13 = sbr.rel (0) target = $region5
    $region4: #{kws_forward.1} parent=1 // pred_region
      _
    $region5: #{kws_forward.1} parent=1 // pred_fallthru
      _
    // Predicated region
    $region6: #{kws_forward.1} parent=1 // pred_check
      _
    $region7: #{kws_forward.1} parent=1 // pred_check_branch
      %15 = sbr.rel (0) target = $region9
    $region8: #{kws_forward.1} parent=1 // pred_region
      %s17 = ssub.s32 8448, 8448
      %18 = vsyncadd [#allocation3], %s17
      %s19 = sshll.u32 [#allocation2], 4
      %s20 = int_to_ptr.vmem [resolvable:$true] %s19
      %25 = dma.hbm_to_vmem [thread:$0]  %s1, 8448, %s20, [#allocation3], 64, 64, 4
    $region9: #{kws_forward.1} parent=1 // pred_fallthru
      _
    // Predicated region
    $region10: #{kws_forward.1} parent=1 // pred_check
      _
    $region11: #{kws_forward.1} parent=1 // pred_check_branch
      %27 = sbr.rel (0) target = $region13
    $region12: #{kws_forward.1} parent=1 // pred_region
      _
    $region13: #{kws_forward.1} parent=1 // pred_fallthru
      _
    // Predicated region
    $region14: #{kws_forward.1} parent=1 // pred_check
      _
    $region15: #{kws_forward.1} parent=1 // pred_check_branch
      %29 = sbr.rel (0) target = $region17
    $region16: #{kws_forward.1} parent=1 // pred_region
      %s31 = ssub.s32 2048, 2048
      %32 = vsyncadd [#allocation5], %s31
      %s33 = sshll.u32 [#allocation4], 4
      %s34 = int_to_ptr.vmem [resolvable:$true] %s33
      %39 = dma.hbm_to_vmem [thread:$0]  %s3, 2048, %s34, [#allocation5], 128, 128, 8
    $region17: #{kws_forward.1} parent=1 // pred_fallthru
      _
    // Predicated region
    $region18: #{kws_forward.1} parent=1 // pred_check
      _
    $region19: #{kws_forward.1} parent=1 // pred_check_branch
      %41 = sbr.rel (0) target = $region21
    $region20: #{kws_forward.1} parent=1 // pred_region
      _
    $region21: #{kws_forward.1} parent=1 // pred_fallthru
      _
    // Predicated region
    $region22: #{kws_forward.1} parent=1 // pred_check
      _
    $region23: #{kws_forward.1} parent=1 // pred_check_branch
      %43 = sbr.rel (0) target = $region25
    $region24: #{kws_forward.1} parent=1 // pred_region
      %44 = dma.done [#allocation3], 8448
    $region25: #{kws_forward.1} parent=1 // pred_fallthru
      _
    // Predicated region
    $region26: #{kws_forward.1} parent=1 // pred_check
      _
    $region27: #{kws_forward.1} parent=1 // pred_check_branch
      %46 = sbr.rel (0) target = $region29
    $region28: #{kws_forward.1} parent=1 // pred_region
      %47 = dma.done [#allocation5], 2048
    $region29: #{kws_forward.1} parent=1 // pred_fallthru
      _
    %v49 = vld [vmem:[%s0] sm:$0xff]
    %v50 = vld [vmem:[%s0 + $0x8] sm:$0xff]
    %v51 = vld [vmem:[%s0 + $0x10] sm:$0xff]
    %v52 = vld [vmem:[%s0 + $0x18] sm:$0xff]
    %v53 = vld [vmem:[%s0 + $0x20] sm:$0xf]
    %v54 = vld [vmem:[#allocation2] sm:$0xf]
    %v55 = vld [vmem:[#allocation2 + $0x4] sm:$0xf]
    %v56 = vld [vmem:[#allocation2 + $0x8] sm:$0xf]
    %v57 = vld [vmem:[#allocation2 + $0xc] sm:$0xf]
    %v58 = vld [vmem:[#allocation2 + $0x10] sm:$0xf]
    %v59 = vld [vmem:[#allocation2 + $0x14] sm:$0xf]
    %v60 = vld [vmem:[#allocation2 + $0x18] sm:$0xf]
    %v61 = vld [vmem:[#allocation2 + $0x1c] sm:$0xf]
    %v62 = vld [vmem:[#allocation2 + $0x20] sm:$0xf]
    %v63 = vld [vmem:[#allocation2 + $0x24] sm:$0xf]
    %v64 = vld [vmem:[#allocation2 + $0x28] sm:$0xf]
    %v65 = vld [vmem:[#allocation2 + $0x2c] sm:$0xf]
    %v66 = vld [vmem:[#allocation2 + $0x30] sm:$0xf]
    %v67 = vld [vmem:[#allocation2 + $0x34] sm:$0xf]
    %v68 = vld [vmem:[#allocation2 + $0x38] sm:$0xf]
    %v69 = vld [vmem:[#allocation2 + $0x3c] sm:$0xf]
    %v70 = vld [vmem:[#allocation2 + $0x40] sm:$0xf]
    %v71 = vld [vmem:[#allocation2 + $0x44] sm:$0xf]
    %v72 = vld [vmem:[#allocation2 + $0x48] sm:$0xf]
    %v73 = vld [vmem:[#allocation2 + $0x4c] sm:$0xf]
    %v74 = vld [vmem:[#allocation2 + $0x50] sm:$0xf]
    %v75 = vld [vmem:[#allocation2 + $0x54] sm:$0xf]
    %v76 = vld [vmem:[#allocation2 + $0x58] sm:$0xf]
    %v77 = vld [vmem:[#allocation2 + $0x5c] sm:$0xf]
    %v78 = vld [vmem:[#allocation2 + $0x60] sm:$0xf]
    %v79 = vld [vmem:[#allocation2 + $0x64] sm:$0xf]
    %v80 = vld [vmem:[#allocation2 + $0x68] sm:$0xf]
    %v81 = vld [vmem:[#allocation2 + $0x6c] sm:$0xf]
    %v82 = vld [vmem:[#allocation2 + $0x70] sm:$0xf]
    %v83 = vld [vmem:[#allocation2 + $0x74] sm:$0xf]
    %v84 = vld [vmem:[#allocation2 + $0x78] sm:$0xf]
    %v85 = vld [vmem:[#allocation2 + $0x7c] sm:$0xf]
    %v86 = vld [vmem:[#allocation2 + $0x80] sm:$0xf]
    %v87 = vld [vmem:[#allocation2 + $0x84] sm:$0xf]
    %v88 = vld [vmem:[#allocation2 + $0x88] sm:$0xf]
    %v89 = vld [vmem:[#allocation2 + $0x8c] sm:$0xf]
    %v90 = vld [vmem:[#allocation2 + $0x90] sm:$0xf]
    %v91 = vld [vmem:[#allocation2 + $0x94] sm:$0xf]
    %v92 = vld [vmem:[#allocation2 + $0x98] sm:$0xf]
    %v93 = vld [vmem:[#allocation2 + $0x9c] sm:$0xf]
    %v94 = vld [vmem:[#allocation2 + $0xa0] sm:$0xf]
    %v95 = vld [vmem:[#allocation2 + $0xa4] sm:$0xf]
    %v96 = vld [vmem:[#allocation2 + $0xa8] sm:$0xf]
    %v97 = vld [vmem:[#allocation2 + $0xac] sm:$0xf]
    %v98 = vld [vmem:[#allocation2 + $0xb0] sm:$0xf]
    %v99 = vld [vmem:[#allocation2 + $0xb4] sm:$0xf]
    %v100 = vld [vmem:[#allocation2 + $0xb8] sm:$0xf]
    %v101 = vld [vmem:[#allocation2 + $0xbc] sm:$0xf]
    %v102 = vld [vmem:[#allocation2 + $0xc0] sm:$0xf]
    %v103 = vld [vmem:[#allocation2 + $0xc4] sm:$0xf]
    %v104 = vld [vmem:[#allocation2 + $0xc8] sm:$0xf]
    %v105 = vld [vmem:[#allocation2 + $0xcc] sm:$0xf]
    %v106 = vld [vmem:[#allocation2 + $0xd0] sm:$0xf]
    %v107 = vld [vmem:[#allocation2 + $0xd4] sm:$0xf]
    %v108 = vld [vmem:[#allocation2 + $0xd8] sm:$0xf]
    %v109 = vld [vmem:[#allocation2 + $0xdc] sm:$0xf]
    %v110 = vld [vmem:[#allocation2 + $0xe0] sm:$0xf]
    %v111 = vld [vmem:[#allocation2 + $0xe4] sm:$0xf]
    %v112 = vld [vmem:[#allocation2 + $0xe8] sm:$0xf]
    %v113 = vld [vmem:[#allocation2 + $0xec] sm:$0xf]
    %v114 = vld [vmem:[#allocation2 + $0xf0] sm:$0xf]
    %v115 = vld [vmem:[#allocation2 + $0xf4] sm:$0xf]
    %v116 = vld [vmem:[#allocation2 + $0xf8] sm:$0xf]
    %v117 = vld [vmem:[#allocation2 + $0xfc] sm:$0xf]
    %v118 = vld [vmem:[#allocation2 + $0x100] sm:$0xf]
    %v119 = vld [vmem:[#allocation2 + $0x104] sm:$0xf]
    %v120 = vld [vmem:[#allocation2 + $0x108] sm:$0xf]
    %v121 = vld [vmem:[#allocation2 + $0x10c] sm:$0xf]
    %v122 = vld [vmem:[#allocation2 + $0x110] sm:$0xf]
    %v123 = vld [vmem:[#allocation2 + $0x114] sm:$0xf]
    %v124 = vld [vmem:[#allocation2 + $0x118] sm:$0xf]
    %v125 = vld [vmem:[#allocation2 + $0x11c] sm:$0xf]
    %v126 = vld [vmem:[#allocation2 + $0x120] sm:$0xf]
    %v127 = vld [vmem:[#allocation2 + $0x124] sm:$0xf]
    %v128 = vld [vmem:[#allocation2 + $0x128] sm:$0xf]
    %v129 = vld [vmem:[#allocation2 + $0x12c] sm:$0xf]
    %v130 = vld [vmem:[#allocation2 + $0x130] sm:$0xf]
    %v131 = vld [vmem:[#allocation2 + $0x134] sm:$0xf]
    %v132 = vld [vmem:[#allocation2 + $0x138] sm:$0xf]
    %v133 = vld [vmem:[#allocation2 + $0x13c] sm:$0xf]
    %v134 = vld [vmem:[#allocation2 + $0x140] sm:$0xf]
    %v135 = vld [vmem:[#allocation2 + $0x144] sm:$0xf]
    %v136 = vld [vmem:[#allocation2 + $0x148] sm:$0xf]
    %v137 = vld [vmem:[#allocation2 + $0x14c] sm:$0xf]
    %v138 = vld [vmem:[#allocation2 + $0x150] sm:$0xf]
    %v139 = vld [vmem:[#allocation2 + $0x154] sm:$0xf]
    %v140 = vld [vmem:[#allocation2 + $0x158] sm:$0xf]
    %v141 = vld [vmem:[#allocation2 + $0x15c] sm:$0xf]
    %v142 = vld [vmem:[#allocation2 + $0x160] sm:$0xf]
    %v143 = vld [vmem:[#allocation2 + $0x164] sm:$0xf]
    %v144 = vld [vmem:[#allocation2 + $0x168] sm:$0xf]
    %v145 = vld [vmem:[#allocation2 + $0x16c] sm:$0xf]
    %v146 = vld [vmem:[#allocation2 + $0x170] sm:$0xf]
    %v147 = vld [vmem:[#allocation2 + $0x174] sm:$0xf]
    %v148 = vld [vmem:[#allocation2 + $0x178] sm:$0xf]
    %v149 = vld [vmem:[#allocation2 + $0x17c] sm:$0xf]
    %v150 = vld [vmem:[#allocation2 + $0x180] sm:$0xf]
    %v151 = vld [vmem:[#allocation2 + $0x184] sm:$0xf]
    %v152 = vld [vmem:[#allocation2 + $0x188] sm:$0xf]
    %v153 = vld [vmem:[#allocation2 + $0x18c] sm:$0xf]
    %v154 = vld [vmem:[#allocation2 + $0x190] sm:$0xf]
    %v155 = vld [vmem:[#allocation2 + $0x194] sm:$0xf]
    %v156 = vld [vmem:[#allocation2 + $0x198] sm:$0xf]
    %v157 = vld [vmem:[#allocation2 + $0x19c] sm:$0xf]
    %v158 = vld [vmem:[#allocation2 + $0x1a0] sm:$0xf]
    %v159 = vld [vmem:[#allocation2 + $0x1a4] sm:$0xf]
    %v160 = vld [vmem:[#allocation2 + $0x1a8] sm:$0xf]
    %v161 = vld [vmem:[#allocation2 + $0x1ac] sm:$0xf]
    %v162 = vld [vmem:[#allocation2 + $0x1b0] sm:$0xf]
    %v163 = vld [vmem:[#allocation2 + $0x1b4] sm:$0xf]
    %v164 = vld [vmem:[#allocation2 + $0x1b8] sm:$0xf]
    %v165 = vld [vmem:[#allocation2 + $0x1bc] sm:$0xf]
    %v166 = vld [vmem:[#allocation2 + $0x1c0] sm:$0xf]
    %v167 = vld [vmem:[#allocation2 + $0x1c4] sm:$0xf]
    %v168 = vld [vmem:[#allocation2 + $0x1c8] sm:$0xf]
    %v169 = vld [vmem:[#allocation2 + $0x1cc] sm:$0xf]
    %v170 = vld [vmem:[#allocation2 + $0x1d0] sm:$0xf]
    %v171 = vld [vmem:[#allocation2 + $0x1d4] sm:$0xf]
    %v172 = vld [vmem:[#allocation2 + $0x1d8] sm:$0xf]
    %v173 = vld [vmem:[#allocation2 + $0x1dc] sm:$0xf]
    %v174 = vld [vmem:[#allocation2 + $0x1e0] sm:$0xf]
    %v175 = vld [vmem:[#allocation2 + $0x1e4] sm:$0xf]
    %v176 = vld [vmem:[#allocation2 + $0x1e8] sm:$0xf]
    %v177 = vld [vmem:[#allocation2 + $0x1ec] sm:$0xf]
    %v178 = vld [vmem:[#allocation2 + $0x1f0] sm:$0xf]
    %v179 = vld [vmem:[#allocation2 + $0x1f4] sm:$0xf]
    %v180 = vld [vmem:[#allocation2 + $0x1f8] sm:$0xf]
    %v181 = vld [vmem:[#allocation2 + $0x1fc] sm:$0xf]
    %v182 = vld [vmem:[#allocation2 + $0x200] sm:$0xf]
    %v183 = vld [vmem:[#allocation2 + $0x204] sm:$0xf]
    %v184 = vld [vmem:[#allocation2 + $0x208] sm:$0xf]
    %v185 = vld [vmem:[#allocation2 + $0x20c] sm:$0x7]
    %v186 = vld [vmem:[%s2] sm:$0x1]
    %v188 = vlaneseq
    %v189 = vshrl.u32 %v188, 7
    %v190 = vsub.s32 0, %v189
    %v191 = vrot.slane %v186, %v190
    %v198 = vunpack.c.l.b16 %v49
    %v199 = vunpack.c.h.b16 %v49
    %v200 = vunpack.c.l.b16 %v50
    %v201 = vunpack.c.h.b16 %v50
    %v202 = vunpack.c.l.b16 %v51
    %v203 = vunpack.c.h.b16 %v51
    %v204 = vunpack.c.l.b16 %v52
    %v205 = vunpack.c.h.b16 %v52
    %v206 = vunpack.c.l.b16 %v53
    %v207 = vpack.c.b16 %v198, %v198
    %v208 = vpack.c.b16 %v199, %v199
    %v209 = vpack.c.b16 %v200, %v200
    %v210 = vpack.c.b16 %v201, %v201
    %v211 = vpack.c.b16 %v202, %v202
    %v212 = vpack.c.b16 %v203, %v203
    %v213 = vpack.c.b16 %v204, %v204
    %v214 = vpack.c.b16 %v205, %v205
    %v215 = vpack.c.b16 %v206, %v206
    %v356 = vunpack.c.l.b16 %v54
    %v357 = vunpack.c.l.b16 %v55
    %v358 = vunpack.c.l.b16 %v56
    %v359 = vunpack.c.l.b16 %v57
    %v360 = vunpack.c.l.b16 %v58
    %v361 = vunpack.c.l.b16 %v59
    %v362 = vunpack.c.l.b16 %v60
    %v363 = vunpack.c.l.b16 %v61
    %v364 = vunpack.c.l.b16 %v62
    %v365 = vunpack.c.l.b16 %v63
    %v366 = vunpack.c.l.b16 %v64
    %v367 = vunpack.c.l.b16 %v65
    %v368 = vunpack.c.l.b16 %v66
    %v369 = vunpack.c.l.b16 %v67
    %v370 = vunpack.c.l.b16 %v68
    %v371 = vunpack.c.l.b16 %v69
    %v372 = vunpack.c.l.b16 %v70
    %v373 = vunpack.c.l.b16 %v71
    %v374 = vunpack.c.l.b16 %v72
    %v375 = vunpack.c.l.b16 %v73
    %v376 = vunpack.c.l.b16 %v74
    %v377 = vunpack.c.l.b16 %v75
    %v378 = vunpack.c.l.b16 %v76
    %v379 = vunpack.c.l.b16 %v77
    %v380 = vunpack.c.l.b16 %v78
    %v381 = vunpack.c.l.b16 %v79
    %v382 = vunpack.c.l.b16 %v80
    %v383 = vunpack.c.l.b16 %v81
    %v384 = vunpack.c.l.b16 %v82
    %v385 = vunpack.c.l.b16 %v83
    %v386 = vunpack.c.l.b16 %v84
    %v387 = vunpack.c.l.b16 %v85
    %v388 = vunpack.c.l.b16 %v86
    %v389 = vunpack.c.l.b16 %v87
    %v390 = vunpack.c.l.b16 %v88
    %v391 = vunpack.c.l.b16 %v89
    %v392 = vunpack.c.l.b16 %v90
    %v393 = vunpack.c.l.b16 %v91
    %v394 = vunpack.c.l.b16 %v92
    %v395 = vunpack.c.l.b16 %v93
    %v396 = vunpack.c.l.b16 %v94
    %v397 = vunpack.c.l.b16 %v95
    %v398 = vunpack.c.l.b16 %v96
    %v399 = vunpack.c.l.b16 %v97
    %v400 = vunpack.c.l.b16 %v98
    %v401 = vunpack.c.l.b16 %v99
    %v402 = vunpack.c.l.b16 %v100
    %v403 = vunpack.c.l.b16 %v101
    %v404 = vunpack.c.l.b16 %v102
    %v405 = vunpack.c.l.b16 %v103
    %v406 = vunpack.c.l.b16 %v104
    %v407 = vunpack.c.l.b16 %v105
    %v408 = vunpack.c.l.b16 %v106
    %v409 = vunpack.c.l.b16 %v107
    %v410 = vunpack.c.l.b16 %v108
    %v411 = vunpack.c.l.b16 %v109
    %v412 = vunpack.c.l.b16 %v110
    %v413 = vunpack.c.l.b16 %v111
    %v414 = vunpack.c.l.b16 %v112
    %v415 = vunpack.c.l.b16 %v113
    %v416 = vunpack.c.l.b16 %v114
    %v417 = vunpack.c.l.b16 %v115
    %v418 = vunpack.c.l.b16 %v116
    %v419 = vunpack.c.l.b16 %v117
    %v420 = vunpack.c.l.b16 %v118
    %v421 = vunpack.c.l.b16 %v119
    %v422 = vunpack.c.l.b16 %v120
    %v423 = vunpack.c.l.b16 %v121
    %v424 = vunpack.c.l.b16 %v122
    %v425 = vunpack.c.l.b16 %v123
    %v426 = vunpack.c.l.b16 %v124
    %v427 = vunpack.c.l.b16 %v125
    %v428 = vunpack.c.l.b16 %v126
    %v429 = vunpack.c.l.b16 %v127
    %v430 = vunpack.c.l.b16 %v128
    %v431 = vunpack.c.l.b16 %v129
    %v432 = vunpack.c.l.b16 %v130
    %v433 = vunpack.c.l.b16 %v131
    %v434 = vunpack.c.l.b16 %v132
    %v435 = vunpack.c.l.b16 %v133
    %v436 = vunpack.c.l.b16 %v134
    %v437 = vunpack.c.l.b16 %v135
    %v438 = vunpack.c.l.b16 %v136
    %v439 = vunpack.c.l.b16 %v137
    %v440 = vunpack.c.l.b16 %v138
    %v441 = vunpack.c.l.b16 %v139
    %v442 = vunpack.c.l.b16 %v140
    %v443 = vunpack.c.l.b16 %v141
    %v444 = vunpack.c.l.b16 %v142
    %v445 = vunpack.c.l.b16 %v143
    %v446 = vunpack.c.l.b16 %v144
    %v447 = vunpack.c.l.b16 %v145
    %v448 = vunpack.c.l.b16 %v146
    %v449 = vunpack.c.l.b16 %v147
    %v450 = vunpack.c.l.b16 %v148
    %v451 = vunpack.c.l.b16 %v149
    %v452 = vunpack.c.l.b16 %v150
    %v453 = vunpack.c.l.b16 %v151
    %v454 = vunpack.c.l.b16 %v152
    %v455 = vunpack.c.l.b16 %v153
    %v456 = vunpack.c.l.b16 %v154
    %v457 = vunpack.c.l.b16 %v155
    %v458 = vunpack.c.l.b16 %v156
    %v459 = vunpack.c.l.b16 %v157
    %v460 = vunpack.c.l.b16 %v158
    %v461 = vunpack.c.l.b16 %v159
    %v462 = vunpack.c.l.b16 %v160
    %v463 = vunpack.c.l.b16 %v161
    %v464 = vunpack.c.l.b16 %v162
    %v465 = vunpack.c.l.b16 %v163
    %v466 = vunpack.c.l.b16 %v164
    %v467 = vunpack.c.l.b16 %v165
    %v468 = vunpack.c.l.b16 %v166
    %v469 = vunpack.c.l.b16 %v167
    %v470 = vunpack.c.l.b16 %v168
    %v471 = vunpack.c.l.b16 %v169
    %v472 = vunpack.c.l.b16 %v170
    %v473 = vunpack.c.l.b16 %v171
    %v474 = vunpack.c.l.b16 %v172
    %v475 = vunpack.c.l.b16 %v173
    %v476 = vunpack.c.l.b16 %v174
    %v477 = vunpack.c.l.b16 %v175
    %v478 = vunpack.c.l.b16 %v176
    %v479 = vunpack.c.l.b16 %v177
    %v480 = vunpack.c.l.b16 %v178
    %v481 = vunpack.c.l.b16 %v179
    %v482 = vunpack.c.l.b16 %v180
    %v483 = vunpack.c.l.b16 %v181
    %v484 = vunpack.c.l.b16 %v182
    %v485 = vunpack.c.l.b16 %v183
    %v486 = vunpack.c.l.b16 %v184
    %v487 = vunpack.c.l.b16 %v185
    %v488 = vpack.c.b16 %v357, %v356
    %v489 = vpack.c.b16 %v359, %v358
    %v490 = vpack.c.b16 %v361, %v360
    %v491 = vpack.c.b16 %v363, %v362
    %v492 = vpack.c.b16 %v365, %v364
    %v493 = vpack.c.b16 %v367, %v366
    %v494 = vpack.c.b16 %v369, %v368
    %v495 = vpack.c.b16 %v371, %v370
    %v496 = vpack.c.b16 %v373, %v372
    %v497 = vpack.c.b16 %v375, %v374
    %v498 = vpack.c.b16 %v377, %v376
    %v499 = vpack.c.b16 %v379, %v378
    %v500 = vpack.c.b16 %v381, %v380
    %v501 = vpack.c.b16 %v383, %v382
    %v502 = vpack.c.b16 %v385, %v384
    %v503 = vpack.c.b16 %v387, %v386
    %v504 = vpack.c.b16 %v389, %v388
    %v505 = vpack.c.b16 %v391, %v390
    %v506 = vpack.c.b16 %v393, %v392
    %v507 = vpack.c.b16 %v395, %v394
    %v508 = vpack.c.b16 %v397, %v396
    %v509 = vpack.c.b16 %v399, %v398
    %v510 = vpack.c.b16 %v401, %v400
    %v511 = vpack.c.b16 %v403, %v402
    %v512 = vpack.c.b16 %v405, %v404
    %v513 = vpack.c.b16 %v407, %v406
    %v514 = vpack.c.b16 %v409, %v408
    %v515 = vpack.c.b16 %v411, %v410
    %v516 = vpack.c.b16 %v413, %v412
    %v517 = vpack.c.b16 %v415, %v414
    %v518 = vpack.c.b16 %v417, %v416
    %v519 = vpack.c.b16 %v419, %v418
    %v520 = vpack.c.b16 %v421, %v420
    %v521 = vpack.c.b16 %v423, %v422
    %v522 = vpack.c.b16 %v425, %v424
    %v523 = vpack.c.b16 %v427, %v426
    %v524 = vpack.c.b16 %v429, %v428
    %v525 = vpack.c.b16 %v431, %v430
    %v526 = vpack.c.b16 %v433, %v432
    %v527 = vpack.c.b16 %v435, %v434
    %v528 = vpack.c.b16 %v437, %v436
    %v529 = vpack.c.b16 %v439, %v438
    %v530 = vpack.c.b16 %v441, %v440
    %v531 = vpack.c.b16 %v443, %v442
    %v532 = vpack.c.b16 %v445, %v444
    %v533 = vpack.c.b16 %v447, %v446
    %v534 = vpack.c.b16 %v449, %v448
    %v535 = vpack.c.b16 %v451, %v450
    %v536 = vpack.c.b16 %v453, %v452
    %v537 = vpack.c.b16 %v455, %v454
    %v538 = vpack.c.b16 %v457, %v456
    %v539 = vpack.c.b16 %v459, %v458
    %v540 = vpack.c.b16 %v461, %v460
    %v541 = vpack.c.b16 %v463, %v462
    %v542 = vpack.c.b16 %v465, %v464
    %v543 = vpack.c.b16 %v467, %v466
    %v544 = vpack.c.b16 %v469, %v468
    %v545 = vpack.c.b16 %v471, %v470
    %v546 = vpack.c.b16 %v473, %v472
    %v547 = vpack.c.b16 %v475, %v474
    %v548 = vpack.c.b16 %v477, %v476
    %v549 = vpack.c.b16 %v479, %v478
    %v550 = vpack.c.b16 %v481, %v480
    %v551 = vpack.c.b16 %v483, %v482
    %v552 = vpack.c.b16 %v485, %v484
    %v553 = vpack.c.b16 %v487, %v486
    %vm619 = vcmask 236544
    %v621 = vsel %vm619, %v215, 0
    %vm623 = vcmask 1045504
    %vm624 = vcmask 1046528
    %v625 = vsel %vm623, 4294967295, 65535
    %v626 = vsel %vm624, %v625, 0
    %v628 = vand.u32 %v553, %v626
    %630 = vmatprep.subr.bf16.mxu0 0
    %631 = vmatpush1.bf16.msra.mxu0 %v488
    %632 = vmatprep.subr.bf16.mxu0 0
    %633 = vmatpush1.bf16.msra.mxu0 %v489
    %634 = vmatprep.subr.bf16.mxu0 0
    %635 = vmatpush1.bf16.msra.mxu0 %v490
    %636 = vmatprep.subr.bf16.mxu0 0
    %637 = vmatpush1.bf16.msra.mxu0 %v491
    %638 = vmatprep.subr.bf16.mxu0 0
    %639 = vmatpush1.bf16.msra.mxu0 %v492
    %640 = vmatprep.subr.bf16.mxu0 0
    %641 = vmatpush1.bf16.msra.mxu0 %v493
    %642 = vmatprep.subr.bf16.mxu0 0
    %643 = vmatpush1.bf16.msra.mxu0 %v494
    %644 = vmatprep.subr.bf16.mxu0 0
    %645 = vmatpush1.bf16.msra.mxu0 %v495
    %646 = vmatprep.subr.bf16.mxu0 0
    %647 = vmatpush1.bf16.msra.mxu0 %v496
    %648 = vmatprep.subr.bf16.mxu0 0
    %649 = vmatpush1.bf16.msra.mxu0 %v497
    %650 = vmatprep.subr.bf16.mxu0 0
    %651 = vmatpush1.bf16.msra.mxu0 %v498
    %652 = vmatprep.subr.bf16.mxu0 0
    %653 = vmatpush1.bf16.msra.mxu0 %v499
    %654 = vmatprep.subr.bf16.mxu0 0
    %655 = vmatpush1.bf16.msra.mxu0 %v500
    %656 = vmatprep.subr.bf16.mxu0 0
    %657 = vmatpush1.bf16.msra.mxu0 %v501
    %658 = vmatprep.subr.bf16.mxu0 0
    %659 = vmatpush1.bf16.msra.mxu0 %v502
    %660 = vmatprep.subr.bf16.mxu0 0
    %661 = vmatpush1.bf16.msra.mxu0 %v503
    %662 = vmatprep.mubr.bf16.mxu0 %v208
    %663 = vmatmul.mubr.bf16.gmra.mrb[0].mxu0 %v207
    %v664 = vpop.f32.mrb[0].mxu0
    %v665 = vadd.f32 %v191, %v664
    %v666 = vpop.f32.mrb[0].mxu0
    %v667 = vpop.f32.mrb[0].mxu0
    %v668 = vpop.f32.mrb[0].mxu0
    %669 = vdwg.mxu0
    %670 = vmatprep.subr.bf16.mxu0 0
    %671 = vmatpush1.bf16.msra.mxu0 %v504
    %672 = vmatprep.subr.bf16.mxu0 0
    %673 = vmatpush1.bf16.msra.mxu0 %v505
    %674 = vmatprep.subr.bf16.mxu0 0
    %675 = vmatpush1.bf16.msra.mxu0 %v506
    %676 = vmatprep.subr.bf16.mxu0 0
    %677 = vmatpush1.bf16.msra.mxu0 %v507
    %678 = vmatprep.subr.bf16.mxu0 0
    %679 = vmatpush1.bf16.msra.mxu0 %v508
    %680 = vmatprep.subr.bf16.mxu0 0
    %681 = vmatpush1.bf16.msra.mxu0 %v509
    %682 = vmatprep.subr.bf16.mxu0 0
    %683 = vmatpush1.bf16.msra.mxu0 %v510
    %684 = vmatprep.subr.bf16.mxu0 0
    %685 = vmatpush1.bf16.msra.mxu0 %v511
    %686 = vmatprep.subr.bf16.mxu0 0
    %687 = vmatpush1.bf16.msra.mxu0 %v512
    %688 = vmatprep.subr.bf16.mxu0 0
    %689 = vmatpush1.bf16.msra.mxu0 %v513
    %690 = vmatprep.subr.bf16.mxu0 0
    %691 = vmatpush1.bf16.msra.mxu0 %v514
    %692 = vmatprep.subr.bf16.mxu0 0
    %693 = vmatpush1.bf16.msra.mxu0 %v515
    %694 = vmatprep.subr.bf16.mxu0 0
    %695 = vmatpush1.bf16.msra.mxu0 %v516
    %696 = vmatprep.subr.bf16.mxu0 0
    %697 = vmatpush1.bf16.msra.mxu0 %v517
    %698 = vmatprep.subr.bf16.mxu0 0
    %699 = vmatpush1.bf16.msra.mxu0 %v518
    %700 = vmatprep.subr.bf16.mxu0 0
    %701 = vmatpush1.bf16.msra.mxu0 %v519
    %702 = vmatprep.mubr.bf16.mxu0 %v210
    %703 = vmatmul.mubr.bf16.gmra.mrb[0].mxu0 %v209
    %v704 = vpop.f32.mrb[0].mxu0
    %v705 = vadd.f32 %v665, %v704
    %v706 = vpop.f32.mrb[0].mxu0
    %v707 = vpop.f32.mrb[0].mxu0
    %v708 = vpop.f32.mrb[0].mxu0
    %709 = vdwg.mxu0
    %710 = vmatprep.subr.bf16.mxu0 0
    %711 = vmatpush1.bf16.msra.mxu0 %v520
    %712 = vmatprep.subr.bf16.mxu0 0
    %713 = vmatpush1.bf16.msra.mxu0 %v521
    %714 = vmatprep.subr.bf16.mxu0 0
    %715 = vmatpush1.bf16.msra.mxu0 %v522
    %716 = vmatprep.subr.bf16.mxu0 0
    %717 = vmatpush1.bf16.msra.mxu0 %v523
    %718 = vmatprep.subr.bf16.mxu0 0
    %719 = vmatpush1.bf16.msra.mxu0 %v524
    %720 = vmatprep.subr.bf16.mxu0 0
    %721 = vmatpush1.bf16.msra.mxu0 %v525
    %722 = vmatprep.subr.bf16.mxu0 0
    %723 = vmatpush1.bf16.msra.mxu0 %v526
    %724 = vmatprep.subr.bf16.mxu0 0
    %725 = vmatpush1.bf16.msra.mxu0 %v527
    %726 = vmatprep.subr.bf16.mxu0 0
    %727 = vmatpush1.bf16.msra.mxu0 %v528
    %728 = vmatprep.subr.bf16.mxu0 0
    %729 = vmatpush1.bf16.msra.mxu0 %v529
    %730 = vmatprep.subr.bf16.mxu0 0
    %731 = vmatpush1.bf16.msra.mxu0 %v530
    %732 = vmatprep.subr.bf16.mxu0 0
    %733 = vmatpush1.bf16.msra.mxu0 %v531
    %734 = vmatprep.subr.bf16.mxu0 0
    %735 = vmatpush1.bf16.msra.mxu0 %v532
    %736 = vmatprep.subr.bf16.mxu0 0
    %737 = vmatpush1.bf16.msra.mxu0 %v533
    %738 = vmatprep.subr.bf16.mxu0 0
    %739 = vmatpush1.bf16.msra.mxu0 %v534
    %740 = vmatprep.subr.bf16.mxu0 0
    %741 = vmatpush1.bf16.msra.mxu0 %v535
    %742 = vmatprep.mubr.bf16.mxu0 %v212
    %743 = vmatmul.mubr.bf16.gmra.mrb[0].mxu0 %v211
    %v744 = vpop.f32.mrb[0].mxu0
    %v745 = vadd.f32 %v705, %v744
    %v746 = vpop.f32.mrb[0].mxu0
    %v747 = vpop.f32.mrb[0].mxu0
    %v748 = vpop.f32.mrb[0].mxu0
    %749 = vdwg.mxu0
    %750 = vmatprep.subr.bf16.mxu0 0
    %751 = vmatpush1.bf16.msra.mxu0 %v536
    %752 = vmatprep.subr.bf16.mxu0 0
    %753 = vmatpush1.bf16.msra.mxu0 %v537
    %754 = vmatprep.subr.bf16.mxu0 0
    %755 = vmatpush1.bf16.msra.mxu0 %v538
    %756 = vmatprep.subr.bf16.mxu0 0
    %757 = vmatpush1.bf16.msra.mxu0 %v539
    %758 = vmatprep.subr.bf16.mxu0 0
    %759 = vmatpush1.bf16.msra.mxu0 %v540
    %760 = vmatprep.subr.bf16.mxu0 0
    %761 = vmatpush1.bf16.msra.mxu0 %v541
    %762 = vmatprep.subr.bf16.mxu0 0
    %763 = vmatpush1.bf16.msra.mxu0 %v542
    %764 = vmatprep.subr.bf16.mxu0 0
    %765 = vmatpush1.bf16.msra.mxu0 %v543
    %766 = vmatprep.subr.bf16.mxu0 0
    %767 = vmatpush1.bf16.msra.mxu0 %v544
    %768 = vmatprep.subr.bf16.mxu0 0
    %769 = vmatpush1.bf16.msra.mxu0 %v545
    %770 = vmatprep.subr.bf16.mxu0 0
    %771 = vmatpush1.bf16.msra.mxu0 %v546
    %772 = vmatprep.subr.bf16.mxu0 0
    %773 = vmatpush1.bf16.msra.mxu0 %v547
    %774 = vmatprep.subr.bf16.mxu0 0
    %775 = vmatpush1.bf16.msra.mxu0 %v548
    %776 = vmatprep.subr.bf16.mxu0 0
    %777 = vmatpush1.bf16.msra.mxu0 %v549
    %778 = vmatprep.subr.bf16.mxu0 0
    %779 = vmatpush1.bf16.msra.mxu0 %v550
    %780 = vmatprep.subr.bf16.mxu0 0
    %781 = vmatpush1.bf16.msra.mxu0 %v551
    %782 = vmatprep.mubr.bf16.mxu0 %v214
    %783 = vmatmul.mubr.bf16.gmra.mrb[0].mxu0 %v213
    %v784 = vpop.f32.mrb[0].mxu0
    %v785 = vadd.f32 %v745, %v784
    %v786 = vpop.f32.mrb[0].mxu0
    %v787 = vpop.f32.mrb[0].mxu0
    %v788 = vpop.f32.mrb[0].mxu0
    %789 = vdwg.mxu0
    %790 = vmatprep.subr.bf16.mxu0 0
    %791 = vmatpush1.bf16.msra.mxu0 %v552
    %792 = vmatprep.subr.bf16.mxu0 0
    %793 = vmatpush1.bf16.msra.mxu0 %v628
    %794 = vmatprep.subr.bf16.mxu0 0
    %795 = vmatpush1.bf16.msra.mxu0 0
    %796 = vmatprep.subr.bf16.mxu0 0
    %797 = vmatpush1.bf16.msra.mxu0 0
    %798 = vmatprep.subr.bf16.mxu0 0
    %799 = vmatpush1.bf16.msra.mxu0 0
    %800 = vmatprep.subr.bf16.mxu0 0
    %801 = vmatpush1.bf16.msra.mxu0 0
    %802 = vmatprep.subr.bf16.mxu0 0
    %803 = vmatpush1.bf16.msra.mxu0 0
    %804 = vmatprep.subr.bf16.mxu0 0
    %805 = vmatpush1.bf16.msra.mxu0 0
    %806 = vmatprep.subr.bf16.mxu0 0
    %807 = vmatpush1.bf16.msra.mxu0 0
    %808 = vmatprep.subr.bf16.mxu0 0
    %809 = vmatpush1.bf16.msra.mxu0 0
    %810 = vmatprep.subr.bf16.mxu0 0
    %811 = vmatpush1.bf16.msra.mxu0 0
    %812 = vmatprep.subr.bf16.mxu0 0
    %813 = vmatpush1.bf16.msra.mxu0 0
    %814 = vmatprep.subr.bf16.mxu0 0
    %815 = vmatpush1.bf16.msra.mxu0 0
    %816 = vmatprep.subr.bf16.mxu0 0
    %817 = vmatpush1.bf16.msra.mxu0 0
    %818 = vmatprep.subr.bf16.mxu0 0
    %819 = vmatpush1.bf16.msra.mxu0 0
    %820 = vmatprep.subr.bf16.mxu0 0
    %821 = vmatpush1.bf16.msra.mxu0 0
    %822 = vmatprep.mubr.bf16.mxu0 0
    %823 = vmatmul.mubr.bf16.gmra.mrb[0].mxu0 %v621
    %v824 = vpop.f32.mrb[0].mxu0
    %v825 = vadd.f32 %v785, %v824
    %v826 = vpop.f32.mrb[0].mxu0
    %v827 = vpop.f32.mrb[0].mxu0
    %v828 = vpop.f32.mrb[0].mxu0
    %829 = vdwg.mxu0
    %v830 = vmax.f32 %v825, 0.0
    %v831 = vld [vmem:[#allocation4] sm:$0xff]
    %v832 = vld [vmem:[#allocation4 + $0x8] sm:$0xff]
    %v833 = vld [vmem:[#allocation4 + $0x10] sm:$0xff]
    %v834 = vld [vmem:[#allocation4 + $0x18] sm:$0xff]
    %v835 = vld [vmem:[#allocation4 + $0x20] sm:$0xff]
    %v836 = vld [vmem:[#allocation4 + $0x28] sm:$0xff]
    %v837 = vld [vmem:[#allocation4 + $0x30] sm:$0xff]
    %v838 = vld [vmem:[#allocation4 + $0x38] sm:$0xff]
    %v839 = vld [vmem:[#allocation4 + $0x40] sm:$0xff]
    %v840 = vld [vmem:[#allocation4 + $0x48] sm:$0xff]
    %v841 = vld [vmem:[#allocation4 + $0x50] sm:$0xff]
    %v842 = vld [vmem:[#allocation4 + $0x58] sm:$0xff]
    %v843 = vld [vmem:[#allocation4 + $0x60] sm:$0xff]
    %v844 = vld [vmem:[#allocation4 + $0x68] sm:$0xff]
    %v845 = vld [vmem:[#allocation4 + $0x70] sm:$0xff]
    %v846 = vld [vmem:[#allocation4 + $0x78] sm:$0xff]
    %v847 = vld [vmem:[%s4] sm:$0x1]
    %v849 = vlaneseq
    %v850 = vshrl.u32 %v849, 7
    %v851 = vsub.s32 0, %v850
    %v852 = vrot.slane %v847, %v851
    %854 = vmatprep.subr.mxu0 0.0
    %855 = vmatpush1.msra.mxu0 %v831
    %856 = vmatprep.subr.mxu0 0.0
    %857 = vmatpush1.msra.mxu0 %v832
    %858 = vmatprep.subr.mxu0 0.0
    %859 = vmatpush1.msra.mxu0 %v833
    %860 = vmatprep.subr.mxu0 0.0
    %861 = vmatpush1.msra.mxu0 %v834
    %862 = vmatprep.subr.mxu0 0.0
    %863 = vmatpush1.msra.mxu0 %v835
    %864 = vmatprep.subr.mxu0 0.0
    %865 = vmatpush1.msra.mxu0 %v836
    %866 = vmatprep.subr.mxu0 0.0
    %867 = vmatpush1.msra.mxu0 %v837
    %868 = vmatprep.subr.mxu0 0.0
    %869 = vmatpush1.msra.mxu0 %v838
    %870 = vmatprep.subr.mxu0 0.0
    %871 = vmatpush1.msra.mxu0 %v839
    %872 = vmatprep.subr.mxu0 0.0
    %873 = vmatpush1.msra.mxu0 %v840
    %874 = vmatprep.subr.mxu0 0.0
    %875 = vmatpush1.msra.mxu0 %v841
    %876 = vmatprep.subr.mxu0 0.0
    %877 = vmatpush1.msra.mxu0 %v842
    %878 = vmatprep.subr.mxu0 0.0
    %879 = vmatpush1.msra.mxu0 %v843
    %880 = vmatprep.subr.mxu0 0.0
    %881 = vmatpush1.msra.mxu0 %v844
    %882 = vmatprep.subr.mxu0 0.0
    %883 = vmatpush1.msra.mxu0 %v845
    %884 = vmatprep.subr.mxu0 0.0
    %885 = vmatpush1.msra.mxu0 %v846
    %886 = vmatprep.subr.mxu0 0.0
    %887 = vmatpush1.msra.mxu0 0.0
    %888 = vmatprep.subr.mxu0 0.0
    %889 = vmatpush1.msra.mxu0 0.0
    %890 = vmatprep.subr.mxu0 0.0
    %891 = vmatpush1.msra.mxu0 0.0
    %892 = vmatprep.subr.mxu0 0.0
    %893 = vmatpush1.msra.mxu0 0.0
    %894 = vmatprep.subr.mxu0 0.0
    %895 = vmatpush1.msra.mxu0 0.0
    %896 = vmatprep.subr.mxu0 0.0
    %897 = vmatpush1.msra.mxu0 0.0
    %898 = vmatprep.subr.mxu0 0.0
    %899 = vmatpush1.msra.mxu0 0.0
    %900 = vmatprep.subr.mxu0 0.0
    %901 = vmatpush1.msra.mxu0 0.0
    %902 = vmatprep.subr.mxu0 0.0
    %903 = vmatpush1.msra.mxu0 0.0
    %904 = vmatprep.subr.mxu0 0.0
    %905 = vmatpush1.msra.mxu0 0.0
    %906 = vmatprep.subr.mxu0 0.0
    %907 = vmatpush1.msra.mxu0 0.0
    %908 = vmatprep.subr.mxu0 0.0
    %909 = vmatpush1.msra.mxu0 0.0
    %910 = vmatprep.subr.mxu0 0.0
    %911 = vmatpush1.msra.mxu0 0.0
    %912 = vmatprep.subr.mxu0 0.0
    %913 = vmatpush1.msra.mxu0 0.0
    %914 = vmatprep.subr.mxu0 0.0
    %915 = vmatpush1.msra.mxu0 0.0
    %916 = vmatprep.subr.mxu0 0.0
    %917 = vmatpush1.msra.mxu0 0.0
    %918 = vmatprep.mubr.f32.mxu0 0.0
    %919 = vmatmul.mubr.f32.gmra.mrb[0].mxu0 %v830
    %v920 = vpop.f32.mrb[0].mxu0
    %v921 = vadd.f32 %v852, %v920
    %v922 = vpop.f32.mrb[0].mxu0
    %923 = vdwg.mxu0
    %924 = vmax.xlane.f32.xlu0 %v921
    %v925 = vpop.xlane.xlu0 %924
    %v926 = vsub.f32 %v921, %v925
    %v927 = vmul.f32 %v926, 1.442695
    %v928 = vpow.pop %v927
    %929 = vadd.xlane.f32.xlu0 %v928
    %v930 = vpop.xlane.xlu0 %929
    %v931 = vlog2.pop %v930
    %v932 = vmul.f32 %v931, 0.6931472
    %v933 = vsub.f32 %v926, %v932
    %934 = vst [vmem:[%s5] sm:$0xff] %v933
    // Predicated region
    $region30: #{kws_forward.1} parent=1 // pred_check
      _
    $region31: #{kws_forward.1} parent=1 // pred_check_branch
      %936 = sbr.rel (0) target = $region33
    $region32: #{kws_forward.1} parent=1 // pred_region
      _
    $region33: #{kws_forward.1} parent=1 // pred_fallthru
      _
    // Predicated region
    $region34: #{kws_forward.1} parent=1 // pred_check
      _
    $region35: #{kws_forward.1} parent=1 // pred_check_branch
      %938 = sbr.rel (0) target = $region37
    $region36: #{kws_forward.1} parent=1 // pred_region
      _
    $region37: #{kws_forward.1} parent=1 // pred_fallthru
      _
    %939 = vsyncpa [#allocation3], 1
    %940 = vsyncpa [#allocation5], 1

</llo_original>
